<compile_context>
chip_gen: v7x
topology: tpu7x:2x2x1
jax: 0.10.0
libtpu: 0.0.40
codegen_flags: <defaults>
</compile_context>

<pallas_src>
import math
import functools

import jax
import jax.numpy as jnp
from jax.experimental import pallas as pl
from jax.experimental.pallas import tpu as pltpu


# ---------------------------------------------------------------------------
# Helpers
# ---------------------------------------------------------------------------

def _vmem_limit_bytes():
    """Generation-aware scoped-VMEM limit (~3/4 of per-core capacity).

    v7x has only 64 MiB per TensorCore, so a hard-coded 64 MiB limit leaves
    zero headroom; v5e/v6e (128 MiB) can go much higher for bigger tiles.
    """
    try:
        cap = int(pltpu.get_tpu_info().vmem_capacity_bytes)
    except Exception:  # conservative fallback (v7x per-TC capacity)
        cap = 64 * 1024 * 1024
    return max(32 * 1024 * 1024, (cap * 3) // 4)


def _swap_halves(a, d):
    """rotate-half building block: concat(second_half, first_half) == roll by d//2.

    The sign of the rotation is folded into the sin table host-side, so only an
    unsigned half-swap is needed here.  For lane-aligned head dims the swap is a
    free XLU rotate; otherwise fall back to a slice+concat (tiny at small D).
    """
    if d % 256 == 0:  # d//2 is a whole number of 128-lane vregs
        return pltpu.roll(a, shift=d // 2, axis=a.ndim - 1)
    return jnp.concatenate([a[..., d // 2:], a[..., : d // 2]], axis=-1)


# ---------------------------------------------------------------------------
# Kernel 1: per-head QKV projection + RoPE
# ---------------------------------------------------------------------------

def _qkv_rope_kernel(x_ref, wq_ref, wk_ref, wv_ref, cos_ref, sin_ref,
                     q_ref, k_ref, v_ref, *, head_dim):
    D = head_dim
    x = x_ref[0]                 # (t_blk, E), native dtype (bf16 fast path)
    cos = cos_ref[...]           # (t_blk, D)
    sin = sin_ref[...]           # (t_blk, D), sign-folded rotate-half sin

    # Per-head projections: native-dtype MXU operands, f32 accumulation.
    # (1/sqrt(D) is already folded into Wq host-side.)
    q = jnp.dot(x, wq_ref[0], preferred_element_type=jnp.float32)   # (t_blk, D) f32
    k = jnp.dot(x, wk_ref[0], preferred_element_type=jnp.float32)
    v = jnp.dot(x, wv_ref[0], preferred_element_type=jnp.float32)

    def rope(a):
        return a * cos + _swap_halves(a, D) * sin

    q_ref[0, 0] = rope(q).astype(q_ref.dtype)
    k_ref[0, 0] = rope(k).astype(k_ref.dtype)
    v_ref[0, 0] = v.astype(v_ref.dtype)


def qkv_rope_projection(x, params, *, heads, t_block=None):
    """x: (B, T, E) -> (q, k, v) each (B, H, T, D), RoPE applied, scale folded."""
    B, T, E = x.shape
    D = E // heads
    t_block = min(t_block or 256, T)
    assert T % t_block == 0
    num_t = T // t_block

    kernel = functools.partial(_qkv_rope_kernel, head_dim=D)
    head_shape = jax.ShapeDtypeStruct((B, heads, T, D), x.dtype)
    w_spec = pl.BlockSpec((1, E, D), lambda b, t, h: (h, 0, 0))
    tbl_spec = pl.BlockSpec((t_block, D), lambda b, t, h: (t, 0))
    out_spec = pl.BlockSpec((1, 1, t_block, D), lambda b, t, h: (b, h, t, 0))

    return pl.pallas_call(
        kernel,
        out_shape=(head_shape, head_shape, head_shape),
        grid=(B, num_t, heads),
        in_specs=[
            pl.BlockSpec((1, t_block, E), lambda b, t, h: (b, t, 0)),   # x rows
            w_spec, w_spec, w_spec,                                     # Wq/Wk/Wv per head
            tbl_spec, tbl_spec,                                         # cos / signed sin
        ],
        out_specs=(out_spec, out_spec, out_spec),
        compiler_params=pltpu.CompilerParams(
            dimension_semantics=("parallel", "parallel", "parallel"),
            vmem_limit_bytes=_vmem_limit_bytes(),
        ),
    )(x, params["wq"], params["wk"], params["wv"], params["cos"], params["sin"])


# ---------------------------------------------------------------------------
# Kernel 2: flash attention (online softmax) + fused output projection
# ---------------------------------------------------------------------------

def _flash_attn_oproj_kernel(q_ref, k_ref, v_ref, wo_ref, o_ref,
                             m_sc, l_sc, acc_sc, out_sc,
                             *, q_block, kv_block):
    qb = pl.program_id(1)
    h = pl.program_id(2)
    kv = pl.program_id(3)
    num_heads = pl.num_programs(2)
    num_kv = pl.num_programs(3)

    @pl.when(kv == 0)
    def _():
        m_sc[...] = jnp.full_like(m_sc, -jnp.inf)
        l_sc[...] = jnp.zeros_like(l_sc)
        acc_sc[...] = jnp.zeros_like(acc_sc)

    @pl.when(jnp.logical_and(h == 0, kv == 0))
    def _():
        out_sc[...] = jnp.zeros_like(out_sc)

    q_start = qb * q_block
    kv_start = kv * kv_block
    # Causal block classification: skipped / diagonal-straddling / fully unmasked.
    needed = kv_start <= q_start + (q_block - 1)
    full = kv_start + (kv_block - 1) <= q_start

    def online_update(apply_mask):
        q = q_ref[0, 0]                                              # (q_blk, D)
        k = k_ref[0, 0]                                              # (kv_blk, D)
        s = jnp.einsum('qd,kd->qk', q, k,
                       preferred_element_type=jnp.float32)           # (q_blk, kv_blk) f32
        if apply_mask:
            row = q_start + jax.lax.broadcasted_iota(jnp.int32, s.shape, 0)
            col = kv_start + jax.lax.broadcasted_iota(jnp.int32, s.shape, 1)
            s = jnp.where(col <= row, s, -1e30)     # keep the mask fill in f32
        m_prev = m_sc[...]
        m_new = jnp.maximum(m_prev, jnp.max(s, axis=-1, keepdims=True))
        alpha = jnp.exp(m_prev - m_new)
        p = jnp.exp(s - m_new)
        l_sc[...] = alpha * l_sc[...] + jnp.sum(p, axis=-1, keepdims=True)
        acc_sc[...] = alpha * acc_sc[...] + jnp.dot(
            p.astype(v_ref.dtype), v_ref[0, 0], preferred_element_type=jnp.float32)
        m_sc[...] = m_new

    @pl.when(jnp.logical_and(needed, jnp.logical_not(full)))
    def _():
        online_update(apply_mask=True)      # block straddles the diagonal

    @pl.when(full)
    def _():
        online_update(apply_mask=False)     # fully unmasked: no iota / select

    @pl.when(kv == num_kv - 1)
    def _():
        # Per-head finalize: exact reciprocal (review: no approx on the softmax
        # denominator), then this head's slice of the output projection,
        # accumulated over the arbitrary head axis.
        ctx = acc_sc[...] * pl.reciprocal(l_sc[...])                 # (q_blk, D) f32
        out_sc[...] += jnp.dot(ctx.astype(wo_ref.dtype), wo_ref[0],
                               preferred_element_type=jnp.float32)

    @pl.when(jnp.logical_and(h == num_heads - 1, kv == num_kv - 1))
    def _():
        o_ref[0] = out_sc[...].astype(o_ref.dtype)                   # lane-dense (q_blk, E)


def flash_attention_oproj(qh, kh, vh, wo, *, out_dtype, q_block, kv_block):
    B, H, T, D = qh.shape
    E = wo.shape[-1]
    assert T % q_block == 0 and T % kv_block == 0
    num_q, num_kv = T // q_block, T // kv_block

    def kv_index(b, qb, h, kv):
        # Clamp to the last causally-needed kv block: fully-masked steps then
        # re-reference the already-resident block, so no DMA is wasted on them.
        last_needed = (qb * q_block + (q_block - 1)) // kv_block
        return (b, h, jnp.minimum(kv, last_needed), 0)

    kernel = functools.partial(_flash_attn_oproj_kernel,
                               q_block=q_block, kv_block=kv_block)
    return pl.pallas_call(
        kernel,
        out_shape=jax.ShapeDtypeStruct((B, T, E), out_dtype),
        grid=(B, num_q, H, num_kv),
        in_specs=[
            pl.BlockSpec((1, 1, q_block, D), lambda b, qb, h, kv: (b, h, qb, 0)),
            pl.BlockSpec((1, 1, kv_block, D), kv_index),
            pl.BlockSpec((1, 1, kv_block, D), kv_index),
            pl.BlockSpec((1, D, E), lambda b, qb, h, kv: (h, 0, 0)),
        ],
        out_specs=pl.BlockSpec((1, q_block, E), lambda b, qb, h, kv: (b, qb, 0)),
        scratch_shapes=[
            pltpu.VMEM((q_block, 1), jnp.float32),   # running row max m
            pltpu.VMEM((q_block, 1), jnp.float32),   # running denominator l
            pltpu.VMEM((q_block, D), jnp.float32),   # per-head context accumulator
            pltpu.VMEM((q_block, E), jnp.float32),   # head-summed projected output
        ],
        compiler_params=pltpu.CompilerParams(
            # kv last (reduction), heads arbitrary (output-projection reduction),
            # B/q parallel so the two v7x TensorCores split the q/batch work.
            dimension_semantics=("parallel", "parallel", "arbitrary", "arbitrary"),
            vmem_limit_bytes=_vmem_limit_bytes(),
        ),
    )(qh, kh, vh, wo)


# ---------------------------------------------------------------------------
# Host-side parameter prep + module-level forward
# ---------------------------------------------------------------------------

def prepare_attention_params(w_attn, w_proj, cos, sin, *, heads, seq_len,
                             param_dtype=None):
    """One-time host-side preprocessing (hoisted out of the forward pass).

    w_attn: (3E, E) torch-layout c_attn weight; w_proj: (E, E) c_proj weight;
    cos/sin: (>=T, D) RoPE tables.  Returns per-head, pre-transposed weight
    slabs plus the per-head RoPE tables (sign folded into sin, 1/sqrt(D) folded
    into Wq), all cast to the model compute dtype (pass bf16 for bf16 models).
    """
    three_e, E = w_attn.shape
    assert three_e == 3 * E and E % heads == 0
    D = E // heads
    assert D % 2 == 0, "head dimension must be even for RoPE"
    assert cos.shape[0] >= seq_len and cos.shape[1] == D
    dtype = param_dtype or w_attn.dtype

    wq, wk, wv = jnp.split(w_attn, 3, axis=0)            # each (E_out, E_in)

    def per_head_in(w):                                   # -> (H, E_in, D)
        return jnp.transpose(w.reshape(heads, D, E), (0, 2, 1))

    scale = 1.0 / math.sqrt(D)
    wq_h = (per_head_in(wq) * scale).astype(dtype)        # scale folded into Wq
    wk_h = per_head_in(wk).astype(dtype)
    wv_h = per_head_in(wv).astype(dtype)
    # Output projection per head: ctx_h (T, D) @ wo_h (D, E), summed over heads.
    wo_h = jnp.transpose(w_proj, (1, 0)).reshape(heads, D, E).astype(dtype)

    cos_t = cos[:seq_len].astype(dtype)                   # (T, D)
    sin_t = sin[:seq_len].astype(jnp.float32)
    first_half = jnp.arange(D) < (D // 2)
    # rotate-half == swap(halves) * [-1 | +1]; fold the sign into the table.
    sin_signed = jnp.where(first_half[None, :], -sin_t, sin_t).astype(dtype)

    return dict(wq=wq_h, wk=wk_h, wv=wv_h, wo=wo_h, cos=cos_t, sin=sin_signed)


def masked_self_attention(x, params, *, heads, q_block=None, kv_block=None,
                          t_block=None):
    """x: (B, T, E); params from prepare_attention_params().  Returns (B, T, E)."""
    B, T, E = x.shape
    # Real runs should use >=256-row tiles on v6e/v7x (>=128 on v5e) to fill
    # the MXU; defaults clamp to T for short sequences.
    q_block = min(q_block or 256, T)
    kv_block = min(kv_block or 256, T)
    qh, kh, vh = qkv_rope_projection(x, params, heads=heads, t_block=t_block)
    return flash_attention_oproj(qh, kh, vh, params["wo"], out_dtype=x.dtype,
                                 q_block=q_block, kv_block=kv_block)


# ---------------------------------------------------------------------------
# RoPE table builder + pure-JAX reference
# ---------------------------------------------------------------------------

def precompute_rope_params(head_dim, theta_base=10000, context_length=4096):
    inv_freq = 1.0 / theta_base ** (
        jnp.arange(0, head_dim, 2)[: head_dim // 2].astype(jnp.float32) / head_dim)
    positions = jnp.arange(context_length).astype(jnp.float32)
    angles = positions[:, None] * inv_freq[None, :]
    angles = jnp.concatenate([angles, angles], axis=1)
    return jnp.cos(angles), jnp.sin(angles)


def reference(x, w_attn, w_proj, cos, sin, heads):
    """Pure-JAX reference mirroring the PyTorch forward."""
    B, T, E = x.shape
    D = E // heads
    qkv = x @ w_attn.T
    q, k, v = qkv[..., :E], qkv[..., E:2 * E], qkv[..., 2 * E:]

    def to_heads(a):
        return a.reshape(B, T, heads, D).transpose(0, 2, 1, 3)      # (B, H, T, D)

    q, k, v = to_heads(q), to_heads(k), to_heads(v)
    c = cos[:T][None, None]
    s = sin[:T][None, None]

    def rope4(a):
        a1, a2 = a[..., : D // 2], a[..., D // 2:]
        rot = jnp.concatenate([-a2, a1], axis=-1)
        return a * c + rot * s

    q, k = rope4(q), rope4(k)
    scores = jnp.einsum('bhtd,bhsd->bhts', q, k) / math.sqrt(D)
    mask = jnp.tril(jnp.ones((T, T), dtype=bool))
    scores = jnp.where(mask[None, None], scores, -jnp.inf)
    p = jax.nn.softmax(scores, axis=-1)
    out = jnp.einsum('bhts,bhsd->bhtd', p, v)
    out = out.transpose(0, 2, 1, 3).reshape(B, T, E)
    return out @ w_proj.T


if __name__ == "__main__":
    # Small shapes consistent with the module; E=128 keeps the output block
    # lane-dense (multiple of 128 lanes), T=32 with q_block=16 / kv_block=8
    # exercises all three causal-block paths (masked / unmasked / skipped).
    B, T, E, H = 2, 32, 128, 8
    D = E // H
    MAX_CTX = 64

    key = jax.random.PRNGKey(0)
    kx, ka, kp = jax.random.split(key, 3)
    x = jax.random.normal(kx, (B, T, E), dtype=jnp.float32)
    # c_attn: Linear(E -> 3E, bias=False) -> weight (3E, E)
    w_attn = jax.random.normal(ka, (3 * E, E), dtype=jnp.float32) * (1.0 / math.sqrt(E))
    # c_proj: Linear(E -> E, bias=False) -> weight (E, E)
    w_proj = jax.random.normal(kp, (E, E), dtype=jnp.float32) * (1.0 / math.sqrt(E))

    cos, sin = precompute_rope_params(head_dim=D, context_length=MAX_CTX)

    # One-time parameter preprocessing (per-head slabs, scale/sign folding).
    # For v5e production use param_dtype=jnp.bfloat16 and bf16 activations.
    params = prepare_attention_params(w_attn, w_proj, cos, sin, heads=H, seq_len=T)

    out = masked_self_attention(x, params, heads=H,
                                q_block=16, kv_block=8, t_block=16)
    out = jax.block_until_ready(out)

    ref = reference(x, w_attn, w_proj, cos, sin, H)
    assert out.shape == (B, T, E)
    max_err = float(jnp.max(jnp.abs(out - ref)))
    # Tolerance covers MXU precision-mode differences between the in-kernel
    # dots and the XLA reference einsums (the approx reciprocal was removed).
    assert jnp.allclose(out, ref, atol=1e-2, rtol=1e-2), (
        f"mismatch vs reference (max abs err {max_err})")

    print("KERNEL_OK")
</pallas_src>

<mosaic_0001>
module attributes {stable_mosaic.version = 11 : i64} {
  func.func @_qkv_rope_kernel(%arg0: i32, %arg1: i32, %arg2: i32, %arg3: memref<1x16x128xf32, #tpu.memory_space<vmem>>, %arg4: memref<1x128x16xf32, #tpu.memory_space<vmem>>, %arg5: memref<1x128x16xf32, #tpu.memory_space<vmem>>, %arg6: memref<1x128x16xf32, #tpu.memory_space<vmem>>, %arg7: memref<16x16xf32, #tpu.memory_space<vmem>>, %arg8: memref<16x16xf32, #tpu.memory_space<vmem>>, %arg9: memref<1x1x16x16xf32, #tpu.memory_space<vmem>>, %arg10: memref<1x1x16x16xf32, #tpu.memory_space<vmem>>, %arg11: memref<1x1x16x16xf32, #tpu.memory_space<vmem>>) attributes {dimension_semantics = [#tpu.dimension_semantics<parallel>, #tpu.dimension_semantics<parallel>, #tpu.dimension_semantics<parallel>], iteration_bounds = array<i64: 2, 2, 8>, scalar_prefetch = 0 : i64, scratch_operands = 0 : i64, tpu.core_type = #tpu.core_type<tc>, window_params = [{transform_indices = @transform_0, window_bounds = array<i64: 1, 16, 128>}, {transform_indices = @transform_1, window_bounds = array<i64: 1, 128, 16>}, {transform_indices = @transform_2, window_bounds = array<i64: 1, 128, 16>}, {transform_indices = @transform_3, window_bounds = array<i64: 1, 128, 16>}, {transform_indices = @transform_4, window_bounds = array<i64: 16, 16>}, {transform_indices = @transform_5, window_bounds = array<i64: 16, 16>}, {transform_indices = @transform_6, window_bounds = array<i64: 1, 1, 16, 16>}, {transform_indices = @transform_7, window_bounds = array<i64: 1, 1, 16, 16>}, {transform_indices = @transform_8, window_bounds = array<i64: 1, 1, 16, 16>}]} {
    %c0 = arith.constant 0 : index
    %c0_0 = arith.constant 0 : index
    %c0_1 = arith.constant 0 : index
    %0 = vector.load %arg3[%c0, %c0_0, %c0_1] : memref<1x16x128xf32, #tpu.memory_space<vmem>>, vector<1x16x128xf32>
    %1 = vector.shape_cast %0 : vector<1x16x128xf32> to vector<16x128xf32>
    %c0_2 = arith.constant 0 : index
    %c0_3 = arith.constant 0 : index
    %2 = vector.load %arg7[%c0_2, %c0_3] : memref<16x16xf32, #tpu.memory_space<vmem>>, vector<16x16xf32>
    %c0_4 = arith.constant 0 : index
    %c0_5 = arith.constant 0 : index
    %3 = vector.load %arg8[%c0_4, %c0_5] : memref<16x16xf32, #tpu.memory_space<vmem>>, vector<16x16xf32>
    %c0_6 = arith.constant 0 : index
    %c0_7 = arith.constant 0 : index
    %c0_8 = arith.constant 0 : index
    %4 = vector.load %arg4[%c0_6, %c0_7, %c0_8] : memref<1x128x16xf32, #tpu.memory_space<vmem>>, vector<1x128x16xf32>
    %5 = vector.shape_cast %4 : vector<1x128x16xf32> to vector<128x16xf32>
    %cst = arith.constant dense<0.000000e+00> : vector<16x16xf32>
    %6 = tpu.matmul %1, %5, %cst {dimension_numbers = #tpu.dot_dimension_numbers<[1], [0], [0], [1], [0, 0, 1, 1], [], []>} : vector<16x128xf32>, vector<128x16xf32>, vector<16x16xf32> -> vector<16x16xf32>
    %c0_9 = arith.constant 0 : index
    %c0_10 = arith.constant 0 : index
    %c0_11 = arith.constant 0 : index
    %7 = vector.load %arg5[%c0_9, %c0_10, %c0_11] : memref<1x128x16xf32, #tpu.memory_space<vmem>>, vector<1x128x16xf32>
    %8 = vector.shape_cast %7 : vector<1x128x16xf32> to vector<128x16xf32>
    %cst_12 = arith.constant dense<0.000000e+00> : vector<16x16xf32>
    %9 = tpu.matmul %1, %8, %cst_12 {dimension_numbers = #tpu.dot_dimension_numbers<[1], [0], [0], [1], [0, 0, 1, 1], [], []>} : vector<16x128xf32>, vector<128x16xf32>, vector<16x16xf32> -> vector<16x16xf32>
    %c0_13 = arith.constant 0 : index
    %c0_14 = arith.constant 0 : index
    %c0_15 = arith.constant 0 : index
    %10 = vector.load %arg6[%c0_13, %c0_14, %c0_15] : memref<1x128x16xf32, #tpu.memory_space<vmem>>, vector<1x128x16xf32>
    %11 = vector.shape_cast %10 : vector<1x128x16xf32> to vector<128x16xf32>
    %cst_16 = arith.constant dense<0.000000e+00> : vector<16x16xf32>
    %12 = tpu.matmul %1, %11, %cst_16 {dimension_numbers = #tpu.dot_dimension_numbers<[1], [0], [0], [1], [0, 0, 1, 1], [], []>} : vector<16x128xf32>, vector<128x16xf32>, vector<16x16xf32> -> vector<16x16xf32>
    %13 = arith.mulf %6, %2 : vector<16x16xf32>
    %14 = vector.extract_strided_slice %6 {offsets = [0, 8], sizes = [16, 8], strides = [1, 1]} : vector<16x16xf32> to vector<16x8xf32>
    %15 = vector.extract_strided_slice %6 {offsets = [0, 0], sizes = [16, 8], strides = [1, 1]} : vector<16x16xf32> to vector<16x8xf32>
    %16 = tpu.concatenate %14, %15 in 1 : vector<16x8xf32>, vector<16x8xf32> -> vector<16x16xf32>
    %17 = arith.mulf %16, %3 : vector<16x16xf32>
    %18 = arith.addf %13, %17 : vector<16x16xf32>
    %c0_17 = arith.constant 0 : index
    %c0_18 = arith.constant 0 : index
    %c0_19 = arith.constant 0 : index
    %c0_20 = arith.constant 0 : index
    %19 = vector.load %arg9[%c0_17, %c0_18, %c0_19, %c0_20] : memref<1x1x16x16xf32, #tpu.memory_space<vmem>>, vector<1x1x16x16xf32>
    %20 = vector.shape_cast %19 : vector<1x1x16x16xf32> to vector<16x16xf32>
    %21 = vector.shape_cast %18 : vector<16x16xf32> to vector<1x1x16x16xf32>
    tpu.vector_store %arg9[%c0_17, %c0_18, %c0_19, %c0_20], %21 {strides = array<i32>} : memref<1x1x16x16xf32, #tpu.memory_space<vmem>>, vector<1x1x16x16xf32>,
    %22 = arith.mulf %9, %2 : vector<16x16xf32>
    %23 = vector.extract_strided_slice %9 {offsets = [0, 8], sizes = [16, 8], strides = [1, 1]} : vector<16x16xf32> to vector<16x8xf32>
    %24 = vector.extract_strided_slice %9 {offsets = [0, 0], sizes = [16, 8], strides = [1, 1]} : vector<16x16xf32> to vector<16x8xf32>
    %25 = tpu.concatenate %23, %24 in 1 : vector<16x8xf32>, vector<16x8xf32> -> vector<16x16xf32>
    %26 = arith.mulf %25, %3 : vector<16x16xf32>
    %27 = arith.addf %22, %26 : vector<16x16xf32>
    %c0_21 = arith.constant 0 : index
    %c0_22 = arith.constant 0 : index
    %c0_23 = arith.constant 0 : index
    %c0_24 = arith.constant 0 : index
    %28 = vector.load %arg10[%c0_21, %c0_22, %c0_23, %c0_24] : memref<1x1x16x16xf32, #tpu.memory_space<vmem>>, vector<1x1x16x16xf32>
    %29 = vector.shape_cast %28 : vector<1x1x16x16xf32> to vector<16x16xf32>
    %30 = vector.shape_cast %27 : vector<16x16xf32> to vector<1x1x16x16xf32>
    tpu.vector_store %arg10[%c0_21, %c0_22, %c0_23, %c0_24], %30 {strides = array<i32>} : memref<1x1x16x16xf32, #tpu.memory_space<vmem>>, vector<1x1x16x16xf32>,
    %c0_25 = arith.constant 0 : index
    %c0_26 = arith.constant 0 : index
    %c0_27 = arith.constant 0 : index
    %c0_28 = arith.constant 0 : index
    %31 = vector.load %arg11[%c0_25, %c0_26, %c0_27, %c0_28] : memref<1x1x16x16xf32, #tpu.memory_space<vmem>>, vector<1x1x16x16xf32>
    %32 = vector.shape_cast %31 : vector<1x1x16x16xf32> to vector<16x16xf32>
    %33 = vector.shape_cast %12 : vector<16x16xf32> to vector<1x1x16x16xf32>
    tpu.vector_store %arg11[%c0_25, %c0_26, %c0_27, %c0_28], %33 {strides = array<i32>} : memref<1x1x16x16xf32, #tpu.memory_space<vmem>>, vector<1x1x16x16xf32>,
    return
  }
  func.func @transform_0(%arg0: i32, %arg1: i32, %arg2: i32) -> (i32, i32, i32) {
    %c0_i32 = arith.constant 0 : i32
    %c0_i32_0 = arith.constant 0 : i32
    return %arg0, %arg1, %c0_i32 : i32, i32, i32
  }
  func.func @transform_1(%arg0: i32, %arg1: i32, %arg2: i32) -> (i32, i32, i32) {
    %c0_i32 = arith.constant 0 : i32
    %c0_i32_0 = arith.constant 0 : i32
    %c0_i32_1 = arith.constant 0 : i32
    return %arg2, %c0_i32, %c0_i32_0 : i32, i32, i32
  }
  func.func @transform_2(%arg0: i32, %arg1: i32, %arg2: i32) -> (i32, i32, i32) {
    %c0_i32 = arith.constant 0 : i32
    %c0_i32_0 = arith.constant 0 : i32
    %c0_i32_1 = arith.constant 0 : i32
    return %arg2, %c0_i32, %c0_i32_0 : i32, i32, i32
  }
  func.func @transform_3(%arg0: i32, %arg1: i32, %arg2: i32) -> (i32, i32, i32) {
    %c0_i32 = arith.constant 0 : i32
    %c0_i32_0 = arith.constant 0 : i32
    %c0_i32_1 = arith.constant 0 : i32
    return %arg2, %c0_i32, %c0_i32_0 : i32, i32, i32
  }
  func.func @transform_4(%arg0: i32, %arg1: i32, %arg2: i32) -> (i32, i32) {
    %c0_i32 = arith.constant 0 : i32
    %c0_i32_0 = arith.constant 0 : i32
    return %arg1, %c0_i32 : i32, i32
  }
  func.func @transform_5(%arg0: i32, %arg1: i32, %arg2: i32) -> (i32, i32) {
    %c0_i32 = arith.constant 0 : i32
    %c0_i32_0 = arith.constant 0 : i32
    return %arg1, %c0_i32 : i32, i32
  }
  func.func @transform_6(%arg0: i32, %arg1: i32, %arg2: i32) -> (i32, i32, i32, i32) {
    %c0_i32 = arith.constant 0 : i32
    %c0_i32_0 = arith.constant 0 : i32
    return %arg0, %arg2, %arg1, %c0_i32 : i32, i32, i32, i32
  }
  func.func @transform_7(%arg0: i32, %arg1: i32, %arg2: i32) -> (i32, i32, i32, i32) {
    %c0_i32 = arith.constant 0 : i32
    %c0_i32_0 = arith.constant 0 : i32
    return %arg0, %arg2, %arg1, %c0_i32 : i32, i32, i32, i32
  }
  func.func @transform_8(%arg0: i32, %arg1: i32, %arg2: i32) -> (i32, i32, i32, i32) {
    %c0_i32 = arith.constant 0 : i32
    %c0_i32_0 = arith.constant 0 : i32
    return %arg0, %arg2, %arg1, %c0_i32 : i32, i32, i32, i32
  }
}

</mosaic_0001>

<llo_original>
// kernel: tpu_custom_call.1
$region0: #{tpu_custom_call.1}
  #allocation0 [shape = 'u32[]', space=smem, size = 0x4, offset = 0x4, fixed_abs, tag = 'smem constant byte address 0x4 - core index']
  #allocation1 [shape = 'u32[144,128]{1,0:T(1,128)}', space=vmem, size = 0x12000, scoped, tag = 'internal scratch']
  %s0 = inlined_call_operand.vmem [shape: f32[2,32,128], index: 0, kind: input, shape index: {}]
  %s1 = inlined_call_operand.vmem [shape: f32[8,128,16], index: 1, kind: input, shape index: {}]
  %s2 = inlined_call_operand.vmem [shape: f32[8,128,16], index: 2, kind: input, shape index: {}]
  %s3 = inlined_call_operand.vmem [shape: f32[8,128,16], index: 3, kind: input, shape index: {}]
  %s4 = inlined_call_operand.vmem [shape: f32[32,16], index: 4, kind: input, shape index: {}]
  %s5 = inlined_call_operand.vmem [shape: f32[32,16], index: 5, kind: input, shape index: {}]
  %s6 = inlined_call_operand.vmem [shape: f32[2,8,32,16], index: 6, kind: output, shape index: {0}]
  %s7 = inlined_call_operand.vmem [shape: f32[2,8,32,16], index: 7, kind: output, shape index: {1}]
  %s8 = inlined_call_operand.vmem [shape: f32[2,8,32,16], index: 8, kind: output, shape index: {2}]
  %9 = xla_tuple %s6, %s7, %s8
  %s10 = sld [smem:[#allocation0]]
  $region73: #{tpu_custom_call.1} parent=0
    _
  %s12 = ssub.s32 1, %s10
  %s13 = scalar_select 0, %s12, %s10
  loop: start=0, step=1, limit=34
  $region2: #{tpu_custom_call.1} parent=0 // loop_pre_header
    _
  $region3: #{tpu_custom_call.1} parent=0 // loop_header
    %s15 = sphi 0, %s19
    %p16 = scmp.ge.s32.totalorder %s15, 34
    %s22 = sphi 0, %s41
    %s23 = sphi 0, %s37
    %s24 = sphi 0, %s33
    %s25 = sphi 0, %s22
    %s26 = sphi 0, %s23
    %s27 = sphi 0, %s24
    %s28 = sphi 0, %s25
    %s29 = sphi 0, %s26
    %s30 = sphi 0, %s27
    %s46 = sphi 0, %s48
    %s49 = sphi 0, %s46
    %s50 = sphi 0, %s49
    %s66 = sphi 0, %s50
    %s72 = sphi 0, %s74
    %s75 = sphi 0, %s72
    %s76 = sphi 0, %s75
    %s92 = sphi 0, %s76
    %s98 = sphi 0, %s100
    %s101 = sphi 0, %s98
    %s102 = sphi 0, %s101
    %s118 = sphi 0, %s102
    %s124 = sphi 0, %s126
    %s127 = sphi 0, %s124
    %s128 = sphi 0, %s127
    %s144 = sphi 0, %s128
    %s150 = sphi 0, %s152
    %s153 = sphi 0, %s150
    %s154 = sphi 0, %s153
    %s170 = sphi 0, %s154
    %s176 = sphi 0, %s178
    %s179 = sphi 0, %s176
    %s180 = sphi 0, %s179
    %s196 = sphi 0, %s180
    %s206 = sphi 0, %s208
    %s209 = sphi 0, %s206
    %s210 = sphi 0, %s209
    %s226 = sphi 0, %s210
    %s236 = sphi 0, %s238
    %s239 = sphi 0, %s236
    %s240 = sphi 0, %s239
    %s256 = sphi 0, %s240
    %s266 = sphi 0, %s268
    %s269 = sphi 0, %s266
    %s270 = sphi 0, %s269
    %s286 = sphi 0, %s270
  $region4: #{tpu_custom_call.1} parent=0 // loop_header_branch
    %18 = sbr.rel (%p16) target = $region8
  $region5: #{tpu_custom_call.1} parent=0 // loop_body
    %s20 = ssub.s32 %s15, 1
    %s21 = ssub.s32 %s15, 2
    %s31 = sadd.s32 1, %s24
    %p32 = scmp.ge.s32.totalorder %s31, 8
    %s33 = scalar_select %p32, 0, %s31
    %s34 = sadd.s32 1, %s23
    %s35 = scalar_select %p32, %s34, %s23
    %p36 = scmp.ge.s32.totalorder %s35, 2
    %s37 = scalar_select %p36, 0, %s35
    %s38 = sadd.s32 1, %s22
    %s39 = scalar_select %p36, %s38, %s22
    %p40 = scmp.ge.s32.totalorder %s39, 2
    %s41 = scalar_select %p40, 0, %s39
    %s42 = ssub.s32 %s22, %s41
    %s43 = ssub.s32 %s23, %s37
    %s44 = sor.u32 %s42, %s43
    %p45 = scmp.eq.s32.totalorder %s44, 0
    %s47 = sadd.s32 %s46, 1
    %s48 = scalar_select %p45, %s46, %s47
    %p51 = pneg %p45
    %p52 = scmp.eq.s32.totalorder %s15, 31
    %p53 = por %p51, %p52
    %p54 = scmp.ne.s32.totalorder %s46, %s49
    %p55 = scmp.eq.s32.totalorder %s15, 0
    %p56 = por %p54, %p55
    %p57 = scmp.ne.s32.totalorder %s46, %s49
    %p58 = scmp.eq.s32.totalorder %s20, 31
    %p59 = por %p57, %p58
    %p60 = scmp.ne.s32.totalorder %s49, %s50
    %p61 = scmp.eq.s32.totalorder %s20, 0
    %p62 = por %p60, %p61
    %p63 = scmp.ne.s32.totalorder %s49, %s50
    %p64 = scmp.eq.s32.totalorder %s21, 31
    %p65 = por %p63, %p64
    %p67 = scmp.ne.s32.totalorder %s50, %s66
    %p68 = scmp.eq.s32.totalorder %s21, 0
    %p69 = por %p67, %p68
    %s70 = ssub.s32 %s24, %s33
    %p71 = scmp.eq.s32.totalorder %s70, 0
    %s73 = sadd.s32 %s72, 1
    %s74 = scalar_select %p71, %s72, %s73
    %p77 = pneg %p71
    %p78 = scmp.eq.s32.totalorder %s15, 31
    %p79 = por %p77, %p78
    %p80 = scmp.ne.s32.totalorder %s72, %s75
    %p81 = scmp.eq.s32.totalorder %s15, 0
    %p82 = por %p80, %p81
    %p83 = scmp.ne.s32.totalorder %s72, %s75
    %p84 = scmp.eq.s32.totalorder %s20, 31
    %p85 = por %p83, %p84
    %p86 = scmp.ne.s32.totalorder %s75, %s76
    %p87 = scmp.eq.s32.totalorder %s20, 0
    %p88 = por %p86, %p87
    %p89 = scmp.ne.s32.totalorder %s75, %s76
    %p90 = scmp.eq.s32.totalorder %s21, 31
    %p91 = por %p89, %p90
    %p93 = scmp.ne.s32.totalorder %s76, %s92
    %p94 = scmp.eq.s32.totalorder %s21, 0
    %p95 = por %p93, %p94
    %s96 = ssub.s32 %s24, %s33
    %p97 = scmp.eq.s32.totalorder %s96, 0
    %s99 = sadd.s32 %s98, 1
    %s100 = scalar_select %p97, %s98, %s99
    %p103 = pneg %p97
    %p104 = scmp.eq.s32.totalorder %s15, 31
    %p105 = por %p103, %p104
    %p106 = scmp.ne.s32.totalorder %s98, %s101
    %p107 = scmp.eq.s32.totalorder %s15, 0
    %p108 = por %p106, %p107
    %p109 = scmp.ne.s32.totalorder %s98, %s101
    %p110 = scmp.eq.s32.totalorder %s20, 31
    %p111 = por %p109, %p110
    %p112 = scmp.ne.s32.totalorder %s101, %s102
    %p113 = scmp.eq.s32.totalorder %s20, 0
    %p114 = por %p112, %p113
    %p115 = scmp.ne.s32.totalorder %s101, %s102
    %p116 = scmp.eq.s32.totalorder %s21, 31
    %p117 = por %p115, %p116
    %p119 = scmp.ne.s32.totalorder %s102, %s118
    %p120 = scmp.eq.s32.totalorder %s21, 0
    %p121 = por %p119, %p120
    %s122 = ssub.s32 %s24, %s33
    %p123 = scmp.eq.s32.totalorder %s122, 0
    %s125 = sadd.s32 %s124, 1
    %s126 = scalar_select %p123, %s124, %s125
    %p129 = pneg %p123
    %p130 = scmp.eq.s32.totalorder %s15, 31
    %p131 = por %p129, %p130
    %p132 = scmp.ne.s32.totalorder %s124, %s127
    %p133 = scmp.eq.s32.totalorder %s15, 0
    %p134 = por %p132, %p133
    %p135 = scmp.ne.s32.totalorder %s124, %s127
    %p136 = scmp.eq.s32.totalorder %s20, 31
    %p137 = por %p135, %p136
    %p138 = scmp.ne.s32.totalorder %s127, %s128
    %p139 = scmp.eq.s32.totalorder %s20, 0
    %p140 = por %p138, %p139
    %p141 = scmp.ne.s32.totalorder %s127, %s128
    %p142 = scmp.eq.s32.totalorder %s21, 31
    %p143 = por %p141, %p142
    %p145 = scmp.ne.s32.totalorder %s128, %s144
    %p146 = scmp.eq.s32.totalorder %s21, 0
    %p147 = por %p145, %p146
    %s148 = ssub.s32 %s23, %s37
    %p149 = scmp.eq.s32.totalorder %s148, 0
    %s151 = sadd.s32 %s150, 1
    %s152 = scalar_select %p149, %s150, %s151
    %p155 = pneg %p149
    %p156 = scmp.eq.s32.totalorder %s15, 31
    %p157 = por %p155, %p156
    %p158 = scmp.ne.s32.totalorder %s150, %s153
    %p159 = scmp.eq.s32.totalorder %s15, 0
    %p160 = por %p158, %p159
    %p161 = scmp.ne.s32.totalorder %s150, %s153
    %p162 = scmp.eq.s32.totalorder %s20, 31
    %p163 = por %p161, %p162
    %p164 = scmp.ne.s32.totalorder %s153, %s154
    %p165 = scmp.eq.s32.totalorder %s20, 0
    %p166 = por %p164, %p165
    %p167 = scmp.ne.s32.totalorder %s153, %s154
    %p168 = scmp.eq.s32.totalorder %s21, 31
    %p169 = por %p167, %p168
    %p171 = scmp.ne.s32.totalorder %s154, %s170
    %p172 = scmp.eq.s32.totalorder %s21, 0
    %p173 = por %p171, %p172
    %s174 = ssub.s32 %s23, %s37
    %p175 = scmp.eq.s32.totalorder %s174, 0
    %s177 = sadd.s32 %s176, 1
    %s178 = scalar_select %p175, %s176, %s177
    %p181 = pneg %p175
    %p182 = scmp.eq.s32.totalorder %s15, 31
    %p183 = por %p181, %p182
    %p184 = scmp.ne.s32.totalorder %s176, %s179
    %p185 = scmp.eq.s32.totalorder %s15, 0
    %p186 = por %p184, %p185
    %p187 = scmp.ne.s32.totalorder %s176, %s179
    %p188 = scmp.eq.s32.totalorder %s20, 31
    %p189 = por %p187, %p188
    %p190 = scmp.ne.s32.totalorder %s179, %s180
    %p191 = scmp.eq.s32.totalorder %s20, 0
    %p192 = por %p190, %p191
    %p193 = scmp.ne.s32.totalorder %s179, %s180
    %p194 = scmp.eq.s32.totalorder %s21, 31
    %p195 = por %p193, %p194
    %p197 = scmp.ne.s32.totalorder %s180, %s196
    %p198 = scmp.eq.s32.totalorder %s21, 0
    %p199 = por %p197, %p198
    %s200 = ssub.s32 %s22, %s41
    %s201 = ssub.s32 %s24, %s33
    %s202 = sor.u32 %s200, %s201
    %s203 = ssub.s32 %s23, %s37
    %s204 = sor.u32 %s202, %s203
    %p205 = scmp.eq.s32.totalorder %s204, 0
    %s207 = sadd.s32 %s206, 1
    %s208 = scalar_select %p205, %s206, %s207
    %p211 = pneg %p205
    %p212 = scmp.eq.s32.totalorder %s15, 31
    %p213 = por %p211, %p212
    %p214 = scmp.ne.s32.totalorder %s206, %s209
    %p215 = scmp.eq.s32.totalorder %s15, 0
    %p216 = por %p214, %p215
    %p217 = scmp.ne.s32.totalorder %s206, %s209
    %p218 = scmp.eq.s32.totalorder %s20, 31
    %p219 = por %p217, %p218
    %p220 = scmp.ne.s32.totalorder %s209, %s210
    %p221 = scmp.eq.s32.totalorder %s20, 0
    %p222 = por %p220, %p221
    %p223 = scmp.ne.s32.totalorder %s209, %s210
    %p224 = scmp.eq.s32.totalorder %s21, 31
    %p225 = por %p223, %p224
    %p227 = scmp.ne.s32.totalorder %s210, %s226
    %p228 = scmp.eq.s32.totalorder %s21, 0
    %p229 = por %p227, %p228
    %s230 = ssub.s32 %s22, %s41
    %s231 = ssub.s32 %s24, %s33
    %s232 = sor.u32 %s230, %s231
    %s233 = ssub.s32 %s23, %s37
    %s234 = sor.u32 %s232, %s233
    %p235 = scmp.eq.s32.totalorder %s234, 0
    %s237 = sadd.s32 %s236, 1
    %s238 = scalar_select %p235, %s236, %s237
    %p241 = pneg %p235
    %p242 = scmp.eq.s32.totalorder %s15, 31
    %p243 = por %p241, %p242
    %p244 = scmp.ne.s32.totalorder %s236, %s239
    %p245 = scmp.eq.s32.totalorder %s15, 0
    %p246 = por %p244, %p245
    %p247 = scmp.ne.s32.totalorder %s236, %s239
    %p248 = scmp.eq.s32.totalorder %s20, 31
    %p249 = por %p247, %p248
    %p250 = scmp.ne.s32.totalorder %s239, %s240
    %p251 = scmp.eq.s32.totalorder %s20, 0
    %p252 = por %p250, %p251
    %p253 = scmp.ne.s32.totalorder %s239, %s240
    %p254 = scmp.eq.s32.totalorder %s21, 31
    %p255 = por %p253, %p254
    %p257 = scmp.ne.s32.totalorder %s240, %s256
    %p258 = scmp.eq.s32.totalorder %s21, 0
    %p259 = por %p257, %p258
    %s260 = ssub.s32 %s22, %s41
    %s261 = ssub.s32 %s24, %s33
    %s262 = sor.u32 %s260, %s261
    %s263 = ssub.s32 %s23, %s37
    %s264 = sor.u32 %s262, %s263
    %p265 = scmp.eq.s32.totalorder %s264, 0
    %s267 = sadd.s32 %s266, 1
    %s268 = scalar_select %p265, %s266, %s267
    %p271 = pneg %p265
    %p272 = scmp.eq.s32.totalorder %s15, 31
    %p273 = por %p271, %p272
    %p274 = scmp.ne.s32.totalorder %s266, %s269
    %p275 = scmp.eq.s32.totalorder %s15, 0
    %p276 = por %p274, %p275
    %p277 = scmp.ne.s32.totalorder %s266, %s269
    %p278 = scmp.eq.s32.totalorder %s20, 31
    %p279 = por %p277, %p278
    %p280 = scmp.ne.s32.totalorder %s269, %s270
    %p281 = scmp.eq.s32.totalorder %s20, 0
    %p282 = por %p280, %p281
    %p283 = scmp.ne.s32.totalorder %s269, %s270
    %p284 = scmp.eq.s32.totalorder %s21, 31
    %p285 = por %p283, %p284
    %p287 = scmp.ne.s32.totalorder %s270, %s286
    %p288 = scmp.eq.s32.totalorder %s21, 0
    %p289 = por %p287, %p288
    %p290 = scmp.le.s32.totalorder 1, %s15
    %p291 = scmp.lt.s32.totalorder %s15, 33
    %p292 = pnand %p290, %p291
    %p293 = pneg %p292
    // Predicated region
    $region9: #{tpu_custom_call.1} parent=5 // pred_check
      _
    $region10: #{tpu_custom_call.1} parent=5 // pred_check_branch
      %295 = sbr.rel (%p292) target = $region12
    $region11: #{tpu_custom_call.1} parent=5 // pred_region
      %s296 = ssub.s32 %s15, 1
    $region12: #{tpu_custom_call.1} parent=5 // pred_fallthru
      _
    %p297 = scmp.lt.s32.totalorder %s15, 32
    // Predicated region
    $region13: #{tpu_custom_call.1} parent=5 // pred_check
      %p298 = pneg %p297
    $region14: #{tpu_custom_call.1} parent=5 // pred_check_branch
      %300 = sbr.rel (%p298) target = $region16
    $region15: #{tpu_custom_call.1} parent=5 // pred_region
      // Predicated region
      $region17: #{tpu_custom_call.1} parent=15 // pred_check
        %p301 = pneg %p56
      $region18: #{tpu_custom_call.1} parent=15 // pred_check_branch
        %303 = sbr.rel (%p301) target = $region20
      $region19: #{tpu_custom_call.1} parent=15 // pred_region
        %s304 = smul.u32 2, %s23
        %p305 = scmp.lt.s32.totalorder %s22, 1
        %s306 = scalar_select %p305, %s22, 1
        %p307 = scmp.lt.s32.totalorder %s304, 3
        %s308 = scalar_select %p307, %s304, 3
        %s309 = smul.addr %s306, 4
        %s310 = sadd.s32 %s308, %s309
        %s311 = smul.addr %s310, 8
        %s312 = scalar_lea.vmem %s0, %s311
        %s313 = smul.u32 2, %s23
      $region20: #{tpu_custom_call.1} parent=15 // pred_fallthru
        _
      // Predicated region
      $region21: #{tpu_custom_call.1} parent=15 // pred_check
        %p314 = pneg %p82
      $region22: #{tpu_custom_call.1} parent=15 // pred_check_branch
        %316 = sbr.rel (%p314) target = $region24
      $region23: #{tpu_custom_call.1} parent=15 // pred_region
        %p317 = scmp.lt.s32.totalorder %s24, 7
        %s318 = scalar_select %p317, %s24, 7
        %s319 = smul.addr %s318, 16
        %s320 = smul.addr %s319, 8
        %s321 = scalar_lea.vmem %s1, %s320
      $region24: #{tpu_custom_call.1} parent=15 // pred_fallthru
        _
      // Predicated region
      $region25: #{tpu_custom_call.1} parent=15 // pred_check
        %p322 = pneg %p108
      $region26: #{tpu_custom_call.1} parent=15 // pred_check_branch
        %324 = sbr.rel (%p322) target = $region28
      $region27: #{tpu_custom_call.1} parent=15 // pred_region
        %p325 = scmp.lt.s32.totalorder %s24, 7
        %s326 = scalar_select %p325, %s24, 7
        %s327 = smul.addr %s326, 16
        %s328 = smul.addr %s327, 8
        %s329 = scalar_lea.vmem %s2, %s328
      $region28: #{tpu_custom_call.1} parent=15 // pred_fallthru
        _
      // Predicated region
      $region29: #{tpu_custom_call.1} parent=15 // pred_check
        %p330 = pneg %p134
      $region30: #{tpu_custom_call.1} parent=15 // pred_check_branch
        %332 = sbr.rel (%p330) target = $region32
      $region31: #{tpu_custom_call.1} parent=15 // pred_region
        %p333 = scmp.lt.s32.totalorder %s24, 7
        %s334 = scalar_select %p333, %s24, 7
        %s335 = smul.addr %s334, 16
        %s336 = smul.addr %s335, 8
        %s337 = scalar_lea.vmem %s3, %s336
      $region32: #{tpu_custom_call.1} parent=15 // pred_fallthru
        _
      // Predicated region
      $region33: #{tpu_custom_call.1} parent=15 // pred_check
        %p338 = pneg %p160
      $region34: #{tpu_custom_call.1} parent=15 // pred_check_branch
        %340 = sbr.rel (%p338) target = $region36
      $region35: #{tpu_custom_call.1} parent=15 // pred_region
        %s341 = smul.u32 2, %s23
        %p342 = scmp.lt.s32.totalorder %s341, 3
        %s343 = scalar_select %p342, %s341, 3
        %s344 = smul.addr %s343, 8
        %s345 = scalar_lea.vmem %s4, %s344
        %s346 = smul.u32 2, %s23
      $region36: #{tpu_custom_call.1} parent=15 // pred_fallthru
        _
      // Predicated region
      $region37: #{tpu_custom_call.1} parent=15 // pred_check
        %p347 = pneg %p186
      $region38: #{tpu_custom_call.1} parent=15 // pred_check_branch
        %349 = sbr.rel (%p347) target = $region40
      $region39: #{tpu_custom_call.1} parent=15 // pred_region
        %s350 = smul.u32 2, %s23
        %p351 = scmp.lt.s32.totalorder %s350, 3
        %s352 = scalar_select %p351, %s350, 3
        %s353 = smul.addr %s352, 8
        %s354 = scalar_lea.vmem %s5, %s353
        %s355 = smul.u32 2, %s23
      $region40: #{tpu_custom_call.1} parent=15 // pred_fallthru
        _
    $region16: #{tpu_custom_call.1} parent=5 // pred_fallthru
      _
    %p356 = scmp.le.s32.totalorder 1, %s15
    %p357 = scmp.lt.s32.totalorder %s15, 33
    %p358 = pnand %p356, %p357
    %p359 = pneg %p358
    // Predicated region
    $region41: #{tpu_custom_call.1} parent=5 // pred_check
      _
    $region42: #{tpu_custom_call.1} parent=5 // pred_check_branch
      %361 = sbr.rel (%p358) target = $region44
    $region43: #{tpu_custom_call.1} parent=5 // pred_region
      %s362 = ssub.s32 %s15, 1
      %s363 = smul.u32 2, %s26
      %p364 = scmp.lt.s32.totalorder %s25, 1
      %s365 = scalar_select %p364, %s25, 1
      %p366 = scmp.lt.s32.totalorder %s363, 3
      %s367 = scalar_select %p366, %s363, 3
      %s368 = smul.addr %s365, 4
      %s369 = sadd.s32 %s367, %s368
      %s370 = smul.addr %s369, 8
      %s371 = scalar_lea.vmem %s0, %s370
      %p372 = pneg %p62
      %p373 = pneg %p59
      %p374 = scmp.lt.s32.totalorder %s27, 7
      %s375 = scalar_select %p374, %s27, 7
      %s376 = smul.addr %s375, 16
      %s377 = smul.addr %s376, 8
      %s378 = scalar_lea.vmem %s1, %s377
      %p379 = pneg %p88
      %p380 = pneg %p85
      %p381 = scmp.lt.s32.totalorder %s27, 7
      %s382 = scalar_select %p381, %s27, 7
      %s383 = smul.addr %s382, 16
      %s384 = smul.addr %s383, 8
      %s385 = scalar_lea.vmem %s2, %s384
      %p386 = pneg %p114
      %p387 = pneg %p111
      %p388 = scmp.lt.s32.totalorder %s27, 7
      %s389 = scalar_select %p388, %s27, 7
      %s390 = smul.addr %s389, 16
      %s391 = smul.addr %s390, 8
      %s392 = scalar_lea.vmem %s3, %s391
      %p393 = pneg %p140
      %p394 = pneg %p137
      %s395 = smul.u32 2, %s26
      %p396 = scmp.lt.s32.totalorder %s395, 3
      %s397 = scalar_select %p396, %s395, 3
      %s398 = smul.addr %s397, 8
      %s399 = scalar_lea.vmem %s4, %s398
      %p400 = pneg %p166
      %p401 = pneg %p163
      %s402 = smul.u32 2, %s26
      %p403 = scmp.lt.s32.totalorder %s402, 3
      %s404 = scalar_select %p403, %s402, 3
      %s405 = smul.addr %s404, 8
      %s406 = scalar_lea.vmem %s5, %s405
      %p407 = pneg %p192
      %p408 = pneg %p189
      %p409 = pneg %p222
      %p410 = pneg %p219
      %s411 = smul.u32 2, %s26
      %p412 = scmp.lt.s32.totalorder %s25, 1
      %s413 = scalar_select %p412, %s25, 1
      %p414 = scmp.lt.s32.totalorder %s27, 7
      %s415 = scalar_select %p414, %s27, 7
      %p416 = scmp.lt.s32.totalorder %s411, 3
      %s417 = scalar_select %p416, %s411, 3
      %s418 = smul.addr %s415, 4
      %s419 = sadd.s32 %s417, %s418
      %s420 = smul.addr %s413, 32
      %s421 = sadd.s32 %s419, %s420
      %s422 = smul.addr %s421, 8
      %s423 = scalar_lea.vmem %s6, %s422
      %p424 = pneg %p252
      %p425 = pneg %p249
      %s426 = smul.u32 2, %s26
      %p427 = scmp.lt.s32.totalorder %s25, 1
      %s428 = scalar_select %p427, %s25, 1
      %p429 = scmp.lt.s32.totalorder %s27, 7
      %s430 = scalar_select %p429, %s27, 7
      %p431 = scmp.lt.s32.totalorder %s426, 3
      %s432 = scalar_select %p431, %s426, 3
      %s433 = smul.addr %s430, 4
      %s434 = sadd.s32 %s432, %s433
      %s435 = smul.addr %s428, 32
      %s436 = sadd.s32 %s434, %s435
      %s437 = smul.addr %s436, 8
      %s438 = scalar_lea.vmem %s7, %s437
      %p439 = pneg %p282
      %p440 = pneg %p279
      %s441 = smul.u32 2, %s26
      %p442 = scmp.lt.s32.totalorder %s25, 1
      %s443 = scalar_select %p442, %s25, 1
      %p444 = scmp.lt.s32.totalorder %s27, 7
      %s445 = scalar_select %p444, %s27, 7
      %p446 = scmp.lt.s32.totalorder %s441, 3
      %s447 = scalar_select %p446, %s441, 3
      %s448 = smul.addr %s445, 4
      %s449 = sadd.s32 %s447, %s448
      %s450 = smul.addr %s443, 32
      %s451 = sadd.s32 %s449, %s450
      %s452 = smul.addr %s451, 8
      %s453 = scalar_lea.vmem %s8, %s452
      %s454 = smul.u32 2, %s26
      %p455 = scmp.lt.s32.totalorder %s25, 1
      %s456 = scalar_select %p455, %s25, 1
      %p457 = scmp.lt.s32.totalorder %s454, 3
      %s458 = scalar_select %p457, %s454, 3
      %s459 = smul.addr %s456, 4
      %s460 = sadd.s32 %s458, %s459
      %s461 = smul.addr %s460, 8
      %s462 = scalar_lea.vmem %s0, %s461
      %s463 = smul.u32 2, %s26
      %p464 = scmp.lt.s32.totalorder %s27, 7
      %s465 = scalar_select %p464, %s27, 7
      %s466 = smul.addr %s465, 16
      %s467 = smul.addr %s466, 8
      %s468 = scalar_lea.vmem %s1, %s467
      %p469 = scmp.lt.s32.totalorder %s27, 7
      %s470 = scalar_select %p469, %s27, 7
      %s471 = smul.addr %s470, 16
      %s472 = smul.addr %s471, 8
      %s473 = scalar_lea.vmem %s2, %s472
      %p474 = scmp.lt.s32.totalorder %s27, 7
      %s475 = scalar_select %p474, %s27, 7
      %s476 = smul.addr %s475, 16
      %s477 = smul.addr %s476, 8
      %s478 = scalar_lea.vmem %s3, %s477
      %s479 = smul.u32 2, %s26
      %p480 = scmp.lt.s32.totalorder %s479, 3
      %s481 = scalar_select %p480, %s479, 3
      %s482 = smul.addr %s481, 8
      %s483 = scalar_lea.vmem %s4, %s482
      %s484 = smul.u32 2, %s26
      %s485 = smul.u32 2, %s26
      %p486 = scmp.lt.s32.totalorder %s485, 3
      %s487 = scalar_select %p486, %s485, 3
      %s488 = smul.addr %s487, 8
      %s489 = scalar_lea.vmem %s5, %s488
      %s490 = smul.u32 2, %s26
      %s491 = smul.u32 2, %s26
      %p492 = scmp.lt.s32.totalorder %s25, 1
      %s493 = scalar_select %p492, %s25, 1
      %p494 = scmp.lt.s32.totalorder %s27, 7
      %s495 = scalar_select %p494, %s27, 7
      %p496 = scmp.lt.s32.totalorder %s491, 3
      %s497 = scalar_select %p496, %s491, 3
      %s498 = smul.addr %s495, 4
      %s499 = sadd.s32 %s497, %s498
      %s500 = smul.addr %s493, 32
      %s501 = sadd.s32 %s499, %s500
      %s502 = smul.addr %s501, 8
      %s503 = scalar_lea.vmem %s6, %s502
      %s504 = smul.u32 2, %s26
      %s505 = smul.u32 2, %s26
      %p506 = scmp.lt.s32.totalorder %s25, 1
      %s507 = scalar_select %p506, %s25, 1
      %p508 = scmp.lt.s32.totalorder %s27, 7
      %s509 = scalar_select %p508, %s27, 7
      %p510 = scmp.lt.s32.totalorder %s505, 3
      %s511 = scalar_select %p510, %s505, 3
      %s512 = smul.addr %s509, 4
      %s513 = sadd.s32 %s511, %s512
      %s514 = smul.addr %s507, 32
      %s515 = sadd.s32 %s513, %s514
      %s516 = smul.addr %s515, 8
      %s517 = scalar_lea.vmem %s7, %s516
      %s518 = smul.u32 2, %s26
      %s519 = smul.u32 2, %s26
      %p520 = scmp.lt.s32.totalorder %s25, 1
      %s521 = scalar_select %p520, %s25, 1
      %p522 = scmp.lt.s32.totalorder %s27, 7
      %s523 = scalar_select %p522, %s27, 7
      %p524 = scmp.lt.s32.totalorder %s519, 3
      %s525 = scalar_select %p524, %s519, 3
      %s526 = smul.addr %s523, 4
      %s527 = sadd.s32 %s525, %s526
      %s528 = smul.addr %s521, 32
      %s529 = sadd.s32 %s527, %s528
      %s530 = smul.addr %s529, 8
      %s531 = scalar_lea.vmem %s8, %s530
      %s532 = smul.u32 2, %s26
      %v533 = vld [vmem:[%s462] sm:$0xff]
      %v534 = vld [vmem:[%s462 + $0x8] sm:$0xff]
      %v535 = vld [vmem:[%s483] sm:$0xff]
      %v536 = vld [vmem:[%s483 + $0x8] sm:$0xff]
      %v537 = vld [vmem:[%s489] sm:$0xff]
      %v538 = vld [vmem:[%s489 + $0x8] sm:$0xff]
      %v539 = vld [vmem:[%s468] sm:$0xff]
      %v540 = vld [vmem:[%s468 + $0x8] sm:$0xff]
      %v541 = vld [vmem:[%s468 + $0x10] sm:$0xff]
      %v542 = vld [vmem:[%s468 + $0x18] sm:$0xff]
      %v543 = vld [vmem:[%s468 + $0x20] sm:$0xff]
      %v544 = vld [vmem:[%s468 + $0x28] sm:$0xff]
      %v545 = vld [vmem:[%s468 + $0x30] sm:$0xff]
      %v546 = vld [vmem:[%s468 + $0x38] sm:$0xff]
      %v547 = vld [vmem:[%s468 + $0x40] sm:$0xff]
      %v548 = vld [vmem:[%s468 + $0x48] sm:$0xff]
      %v549 = vld [vmem:[%s468 + $0x50] sm:$0xff]
      %v550 = vld [vmem:[%s468 + $0x58] sm:$0xff]
      %v551 = vld [vmem:[%s468 + $0x60] sm:$0xff]
      %v552 = vld [vmem:[%s468 + $0x68] sm:$0xff]
      %v553 = vld [vmem:[%s468 + $0x70] sm:$0xff]
      %v554 = vld [vmem:[%s468 + $0x78] sm:$0xff]
      %555 = vmatprep.subr.mxu0 0.0
      %556 = vmatpush1.msra.mxu0 %v539
      %557 = vmatprep.subr.mxu0 0.0
      %558 = vmatpush1.msra.mxu0 %v540
      %559 = vmatprep.subr.mxu0 0.0
      %560 = vmatpush1.msra.mxu0 %v541
      %561 = vmatprep.subr.mxu0 0.0
      %562 = vmatpush1.msra.mxu0 %v542
      %563 = vmatprep.subr.mxu0 0.0
      %564 = vmatpush1.msra.mxu0 %v543
      %565 = vmatprep.subr.mxu0 0.0
      %566 = vmatpush1.msra.mxu0 %v544
      %567 = vmatprep.subr.mxu0 0.0
      %568 = vmatpush1.msra.mxu0 %v545
      %569 = vmatprep.subr.mxu0 0.0
      %570 = vmatpush1.msra.mxu0 %v546
      %571 = vmatprep.subr.mxu0 0.0
      %572 = vmatpush1.msra.mxu0 %v547
      %573 = vmatprep.subr.mxu0 0.0
      %574 = vmatpush1.msra.mxu0 %v548
      %575 = vmatprep.subr.mxu0 0.0
      %576 = vmatpush1.msra.mxu0 %v549
      %577 = vmatprep.subr.mxu0 0.0
      %578 = vmatpush1.msra.mxu0 %v550
      %579 = vmatprep.subr.mxu0 0.0
      %580 = vmatpush1.msra.mxu0 %v551
      %581 = vmatprep.subr.mxu0 0.0
      %582 = vmatpush1.msra.mxu0 %v552
      %583 = vmatprep.subr.mxu0 0.0
      %584 = vmatpush1.msra.mxu0 %v553
      %585 = vmatprep.subr.mxu0 0.0
      %586 = vmatpush1.msra.mxu0 %v554
      %587 = vmatprep.subr.mxu0 0.0
      %588 = vmatpush1.msra.mxu0 0.0
      %589 = vmatprep.subr.mxu0 0.0
      %590 = vmatpush1.msra.mxu0 0.0
      %591 = vmatprep.subr.mxu0 0.0
      %592 = vmatpush1.msra.mxu0 0.0
      %593 = vmatprep.subr.mxu0 0.0
      %594 = vmatpush1.msra.mxu0 0.0
      %595 = vmatprep.subr.mxu0 0.0
      %596 = vmatpush1.msra.mxu0 0.0
      %597 = vmatprep.subr.mxu0 0.0
      %598 = vmatpush1.msra.mxu0 0.0
      %599 = vmatprep.subr.mxu0 0.0
      %600 = vmatpush1.msra.mxu0 0.0
      %601 = vmatprep.subr.mxu0 0.0
      %602 = vmatpush1.msra.mxu0 0.0
      %603 = vmatprep.subr.mxu0 0.0
      %604 = vmatpush1.msra.mxu0 0.0
      %605 = vmatprep.subr.mxu0 0.0
      %606 = vmatpush1.msra.mxu0 0.0
      %607 = vmatprep.subr.mxu0 0.0
      %608 = vmatpush1.msra.mxu0 0.0
      %609 = vmatprep.subr.mxu0 0.0
      %610 = vmatpush1.msra.mxu0 0.0
      %611 = vmatprep.subr.mxu0 0.0
      %612 = vmatpush1.msra.mxu0 0.0
      %613 = vmatprep.subr.mxu0 0.0
      %614 = vmatpush1.msra.mxu0 0.0
      %615 = vmatprep.subr.mxu0 0.0
      %616 = vmatpush1.msra.mxu0 0.0
      %617 = vmatprep.subr.mxu0 0.0
      %618 = vmatpush1.msra.mxu0 0.0
      %619 = vmatprep.mubr.f32.mxu0 0.0
      %620 = vmatmul.mubr.f32.gmra.mrb[0].mxu0 %v533
      %v621 = vpop.f32.mrb[0].mxu0
      %v622 = vadd.f32 0.0, %v621
      %v623 = vpop.f32.mrb[0].mxu0
      %624 = vmatprep.mubr.f32.mxu0 0.0
      %625 = vmatmul.mubr.f32.gmra.mrb[0].mxu0 %v534
      %v626 = vpop.f32.mrb[0].mxu0
      %v627 = vadd.f32 0.0, %v626
      %v628 = vpop.f32.mrb[0].mxu0
      %629 = vdwg.mxu0
      %v630 = vld [vmem:[%s473] sm:$0xff]
      %v631 = vld [vmem:[%s473 + $0x8] sm:$0xff]
      %v632 = vld [vmem:[%s473 + $0x10] sm:$0xff]
      %v633 = vld [vmem:[%s473 + $0x18] sm:$0xff]
      %v634 = vld [vmem:[%s473 + $0x20] sm:$0xff]
      %v635 = vld [vmem:[%s473 + $0x28] sm:$0xff]
      %v636 = vld [vmem:[%s473 + $0x30] sm:$0xff]
      %v637 = vld [vmem:[%s473 + $0x38] sm:$0xff]
      %v638 = vld [vmem:[%s473 + $0x40] sm:$0xff]
      %v639 = vld [vmem:[%s473 + $0x48] sm:$0xff]
      %v640 = vld [vmem:[%s473 + $0x50] sm:$0xff]
      %v641 = vld [vmem:[%s473 + $0x58] sm:$0xff]
      %v642 = vld [vmem:[%s473 + $0x60] sm:$0xff]
      %v643 = vld [vmem:[%s473 + $0x68] sm:$0xff]
      %v644 = vld [vmem:[%s473 + $0x70] sm:$0xff]
      %v645 = vld [vmem:[%s473 + $0x78] sm:$0xff]
      %646 = vmatprep.subr.mxu0 0.0
      %647 = vmatpush1.msra.mxu0 %v630
      %648 = vmatprep.subr.mxu0 0.0
      %649 = vmatpush1.msra.mxu0 %v631
      %650 = vmatprep.subr.mxu0 0.0
      %651 = vmatpush1.msra.mxu0 %v632
      %652 = vmatprep.subr.mxu0 0.0
      %653 = vmatpush1.msra.mxu0 %v633
      %654 = vmatprep.subr.mxu0 0.0
      %655 = vmatpush1.msra.mxu0 %v634
      %656 = vmatprep.subr.mxu0 0.0
      %657 = vmatpush1.msra.mxu0 %v635
      %658 = vmatprep.subr.mxu0 0.0
      %659 = vmatpush1.msra.mxu0 %v636
      %660 = vmatprep.subr.mxu0 0.0
      %661 = vmatpush1.msra.mxu0 %v637
      %662 = vmatprep.subr.mxu0 0.0
      %663 = vmatpush1.msra.mxu0 %v638
      %664 = vmatprep.subr.mxu0 0.0
      %665 = vmatpush1.msra.mxu0 %v639
      %666 = vmatprep.subr.mxu0 0.0
      %667 = vmatpush1.msra.mxu0 %v640
      %668 = vmatprep.subr.mxu0 0.0
      %669 = vmatpush1.msra.mxu0 %v641
      %670 = vmatprep.subr.mxu0 0.0
      %671 = vmatpush1.msra.mxu0 %v642
      %672 = vmatprep.subr.mxu0 0.0
      %673 = vmatpush1.msra.mxu0 %v643
      %674 = vmatprep.subr.mxu0 0.0
      %675 = vmatpush1.msra.mxu0 %v644
      %676 = vmatprep.subr.mxu0 0.0
      %677 = vmatpush1.msra.mxu0 %v645
      %678 = vmatprep.subr.mxu0 0.0
      %679 = vmatpush1.msra.mxu0 0.0
      %680 = vmatprep.subr.mxu0 0.0
      %681 = vmatpush1.msra.mxu0 0.0
      %682 = vmatprep.subr.mxu0 0.0
      %683 = vmatpush1.msra.mxu0 0.0
      %684 = vmatprep.subr.mxu0 0.0
      %685 = vmatpush1.msra.mxu0 0.0
      %686 = vmatprep.subr.mxu0 0.0
      %687 = vmatpush1.msra.mxu0 0.0
      %688 = vmatprep.subr.mxu0 0.0
      %689 = vmatpush1.msra.mxu0 0.0
      %690 = vmatprep.subr.mxu0 0.0
      %691 = vmatpush1.msra.mxu0 0.0
      %692 = vmatprep.subr.mxu0 0.0
      %693 = vmatpush1.msra.mxu0 0.0
      %694 = vmatprep.subr.mxu0 0.0
      %695 = vmatpush1.msra.mxu0 0.0
      %696 = vmatprep.subr.mxu0 0.0
      %697 = vmatpush1.msra.mxu0 0.0
      %698 = vmatprep.subr.mxu0 0.0
      %699 = vmatpush1.msra.mxu0 0.0
      %700 = vmatprep.subr.mxu0 0.0
      %701 = vmatpush1.msra.mxu0 0.0
      %702 = vmatprep.subr.mxu0 0.0
      %703 = vmatpush1.msra.mxu0 0.0
      %704 = vmatprep.subr.mxu0 0.0
      %705 = vmatpush1.msra.mxu0 0.0
      %706 = vmatprep.subr.mxu0 0.0
      %707 = vmatpush1.msra.mxu0 0.0
      %708 = vmatprep.subr.mxu0 0.0
      %709 = vmatpush1.msra.mxu0 0.0
      %710 = vmatprep.mubr.f32.mxu0 0.0
      %711 = vmatmul.mubr.f32.gmra.mrb[0].mxu0 %v533
      %v712 = vpop.f32.mrb[0].mxu0
      %v713 = vadd.f32 0.0, %v712
      %v714 = vpop.f32.mrb[0].mxu0
      %715 = vmatprep.mubr.f32.mxu0 0.0
      %716 = vmatmul.mubr.f32.gmra.mrb[0].mxu0 %v534
      %v717 = vpop.f32.mrb[0].mxu0
      %v718 = vadd.f32 0.0, %v717
      %v719 = vpop.f32.mrb[0].mxu0
      %720 = vdwg.mxu0
      %v721 = vld [vmem:[%s478] sm:$0xff]
      %v722 = vld [vmem:[%s478 + $0x8] sm:$0xff]
      %v723 = vld [vmem:[%s478 + $0x10] sm:$0xff]
      %v724 = vld [vmem:[%s478 + $0x18] sm:$0xff]
      %v725 = vld [vmem:[%s478 + $0x20] sm:$0xff]
      %v726 = vld [vmem:[%s478 + $0x28] sm:$0xff]
      %v727 = vld [vmem:[%s478 + $0x30] sm:$0xff]
      %v728 = vld [vmem:[%s478 + $0x38] sm:$0xff]
      %v729 = vld [vmem:[%s478 + $0x40] sm:$0xff]
      %v730 = vld [vmem:[%s478 + $0x48] sm:$0xff]
      %v731 = vld [vmem:[%s478 + $0x50] sm:$0xff]
      %v732 = vld [vmem:[%s478 + $0x58] sm:$0xff]
      %v733 = vld [vmem:[%s478 + $0x60] sm:$0xff]
      %v734 = vld [vmem:[%s478 + $0x68] sm:$0xff]
      %v735 = vld [vmem:[%s478 + $0x70] sm:$0xff]
      %v736 = vld [vmem:[%s478 + $0x78] sm:$0xff]
      %737 = vmatprep.subr.mxu0 0.0
      %738 = vmatpush1.msra.mxu0 %v721
      %739 = vmatprep.subr.mxu0 0.0
      %740 = vmatpush1.msra.mxu0 %v722
      %741 = vmatprep.subr.mxu0 0.0
      %742 = vmatpush1.msra.mxu0 %v723
      %743 = vmatprep.subr.mxu0 0.0
      %744 = vmatpush1.msra.mxu0 %v724
      %745 = vmatprep.subr.mxu0 0.0
      %746 = vmatpush1.msra.mxu0 %v725
      %747 = vmatprep.subr.mxu0 0.0
      %748 = vmatpush1.msra.mxu0 %v726
      %749 = vmatprep.subr.mxu0 0.0
      %750 = vmatpush1.msra.mxu0 %v727
      %751 = vmatprep.subr.mxu0 0.0
      %752 = vmatpush1.msra.mxu0 %v728
      %753 = vmatprep.subr.mxu0 0.0
      %754 = vmatpush1.msra.mxu0 %v729
      %755 = vmatprep.subr.mxu0 0.0
      %756 = vmatpush1.msra.mxu0 %v730
      %757 = vmatprep.subr.mxu0 0.0
      %758 = vmatpush1.msra.mxu0 %v731
      %759 = vmatprep.subr.mxu0 0.0
      %760 = vmatpush1.msra.mxu0 %v732
      %761 = vmatprep.subr.mxu0 0.0
      %762 = vmatpush1.msra.mxu0 %v733
      %763 = vmatprep.subr.mxu0 0.0
      %764 = vmatpush1.msra.mxu0 %v734
      %765 = vmatprep.subr.mxu0 0.0
      %766 = vmatpush1.msra.mxu0 %v735
      %767 = vmatprep.subr.mxu0 0.0
      %768 = vmatpush1.msra.mxu0 %v736
      %769 = vmatprep.subr.mxu0 0.0
      %770 = vmatpush1.msra.mxu0 0.0
      %771 = vmatprep.subr.mxu0 0.0
      %772 = vmatpush1.msra.mxu0 0.0
      %773 = vmatprep.subr.mxu0 0.0
      %774 = vmatpush1.msra.mxu0 0.0
      %775 = vmatprep.subr.mxu0 0.0
      %776 = vmatpush1.msra.mxu0 0.0
      %777 = vmatprep.subr.mxu0 0.0
      %778 = vmatpush1.msra.mxu0 0.0
      %779 = vmatprep.subr.mxu0 0.0
      %780 = vmatpush1.msra.mxu0 0.0
      %781 = vmatprep.subr.mxu0 0.0
      %782 = vmatpush1.msra.mxu0 0.0
      %783 = vmatprep.subr.mxu0 0.0
      %784 = vmatpush1.msra.mxu0 0.0
      %785 = vmatprep.subr.mxu0 0.0
      %786 = vmatpush1.msra.mxu0 0.0
      %787 = vmatprep.subr.mxu0 0.0
      %788 = vmatpush1.msra.mxu0 0.0
      %789 = vmatprep.subr.mxu0 0.0
      %790 = vmatpush1.msra.mxu0 0.0
      %791 = vmatprep.subr.mxu0 0.0
      %792 = vmatpush1.msra.mxu0 0.0
      %793 = vmatprep.subr.mxu0 0.0
      %794 = vmatpush1.msra.mxu0 0.0
      %795 = vmatprep.subr.mxu0 0.0
      %796 = vmatpush1.msra.mxu0 0.0
      %797 = vmatprep.subr.mxu0 0.0
      %798 = vmatpush1.msra.mxu0 0.0
      %799 = vmatprep.subr.mxu0 0.0
      %800 = vmatpush1.msra.mxu0 0.0
      %801 = vmatprep.mubr.f32.mxu0 0.0
      %802 = vmatmul.mubr.f32.gmra.mrb[0].mxu0 %v533
      %v803 = vpop.f32.mrb[0].mxu0
      %v804 = vadd.f32 0.0, %v803
      %v805 = vpop.f32.mrb[0].mxu0
      %806 = vmatprep.mubr.f32.mxu0 0.0
      %807 = vmatmul.mubr.f32.gmra.mrb[0].mxu0 %v534
      %v808 = vpop.f32.mrb[0].mxu0
      %v809 = vadd.f32 0.0, %v808
      %v810 = vpop.f32.mrb[0].mxu0
      %811 = vdwg.mxu0
      %v812 = vmul.f32 %v622, %v535
      %v813 = vmul.f32 %v627, %v536
      %816 = vrot.lane.b32.xlu0 %v622, 120
      %v817 = vpop.permute.xlu0 %816
      %818 = vrot.lane.b32.xlu0 %v627, 120
      %v819 = vpop.permute.xlu0 %818
      %822 = vrot.lane.b32.xlu0 %v622, 8
      %v823 = vpop.permute.xlu0 %822
      %824 = vrot.lane.b32.xlu0 %v627, 8
      %v825 = vpop.permute.xlu0 %824
      %vm828 = vcmask 64512
      %v829 = vsel %vm828, %v817, %v823
      %v830 = vsel %vm828, %v819, %v825
      %v831 = vmul.f32 %v829, %v537
      %v832 = vmul.f32 %v830, %v538
      %v833 = vadd.f32 %v812, %v831
      %v834 = vadd.f32 %v813, %v832
      %vm835 = vcmask 130048
      %836 = vst.msk [vmem:[%s503] sm:$0xff] %vm835, %v833
      %837 = vst.msk [vmem:[%s503 + $0x8] sm:$0xff] %vm835, %v834
      %v838 = vmul.f32 %v713, %v535
      %v839 = vmul.f32 %v718, %v536
      %842 = vrot.lane.b32.xlu0 %v713, 120
      %v843 = vpop.permute.xlu0 %842
      %844 = vrot.lane.b32.xlu0 %v718, 120
      %v845 = vpop.permute.xlu0 %844
      %848 = vrot.lane.b32.xlu0 %v713, 8
      %v849 = vpop.permute.xlu0 %848
      %850 = vrot.lane.b32.xlu0 %v718, 8
      %v851 = vpop.permute.xlu0 %850
      %v854 = vsel %vm828, %v843, %v849
      %v855 = vsel %vm828, %v845, %v851
      %v856 = vmul.f32 %v854, %v537
      %v857 = vmul.f32 %v855, %v538
      %v858 = vadd.f32 %v838, %v856
      %v859 = vadd.f32 %v839, %v857
      %860 = vst.msk [vmem:[%s517] sm:$0xff] %vm835, %v858
      %861 = vst.msk [vmem:[%s517 + $0x8] sm:$0xff] %vm835, %v859
      %862 = vst.msk [vmem:[%s531] sm:$0xff] %vm835, %v804
      %863 = vst.msk [vmem:[%s531 + $0x8] sm:$0xff] %vm835, %v809
      %s864 = smul.u32 2, %s26
      %p865 = scmp.lt.s32.totalorder %s25, 1
      %s866 = scalar_select %p865, %s25, 1
      %p867 = scmp.lt.s32.totalorder %s27, 7
      %s868 = scalar_select %p867, %s27, 7
      %p869 = scmp.lt.s32.totalorder %s864, 3
      %s870 = scalar_select %p869, %s864, 3
      %s871 = smul.addr %s868, 4
      %s872 = sadd.s32 %s870, %s871
      %s873 = smul.addr %s866, 32
      %s874 = sadd.s32 %s872, %s873
      %s875 = smul.addr %s874, 8
      %s876 = scalar_lea.vmem %s6, %s875
      %s877 = smul.u32 2, %s26
      %p878 = scmp.lt.s32.totalorder %s25, 1
      %s879 = scalar_select %p878, %s25, 1
      %p880 = scmp.lt.s32.totalorder %s27, 7
      %s881 = scalar_select %p880, %s27, 7
      %p882 = scmp.lt.s32.totalorder %s877, 3
      %s883 = scalar_select %p882, %s877, 3
      %s884 = smul.addr %s881, 4
      %s885 = sadd.s32 %s883, %s884
      %s886 = smul.addr %s879, 32
      %s887 = sadd.s32 %s885, %s886
      %s888 = smul.addr %s887, 8
      %s889 = scalar_lea.vmem %s7, %s888
      %s890 = smul.u32 2, %s26
      %p891 = scmp.lt.s32.totalorder %s25, 1
      %s892 = scalar_select %p891, %s25, 1
      %p893 = scmp.lt.s32.totalorder %s27, 7
      %s894 = scalar_select %p893, %s27, 7
      %p895 = scmp.lt.s32.totalorder %s890, 3
      %s896 = scalar_select %p895, %s890, 3
      %s897 = smul.addr %s894, 4
      %s898 = sadd.s32 %s896, %s897
      %s899 = smul.addr %s892, 32
      %s900 = sadd.s32 %s898, %s899
      %s901 = smul.addr %s900, 8
      %s902 = scalar_lea.vmem %s8, %s901
      // Predicated region
      $region45: #{tpu_custom_call.1} parent=43 // pred_check
        %p903 = pneg %p219
      $region46: #{tpu_custom_call.1} parent=43 // pred_check_branch
        %905 = sbr.rel (%p903) target = $region48
      $region47: #{tpu_custom_call.1} parent=43 // pred_region
        %s906 = smul.u32 2, %s26
      $region48: #{tpu_custom_call.1} parent=43 // pred_fallthru
        _
      // Predicated region
      $region49: #{tpu_custom_call.1} parent=43 // pred_check
        %p907 = pneg %p249
      $region50: #{tpu_custom_call.1} parent=43 // pred_check_branch
        %909 = sbr.rel (%p907) target = $region52
      $region51: #{tpu_custom_call.1} parent=43 // pred_region
        %s910 = smul.u32 2, %s26
      $region52: #{tpu_custom_call.1} parent=43 // pred_fallthru
        _
      // Predicated region
      $region53: #{tpu_custom_call.1} parent=43 // pred_check
        %p911 = pneg %p279
      $region54: #{tpu_custom_call.1} parent=43 // pred_check_branch
        %913 = sbr.rel (%p911) target = $region56
      $region55: #{tpu_custom_call.1} parent=43 // pred_region
        %s914 = smul.u32 2, %s26
      $region56: #{tpu_custom_call.1} parent=43 // pred_fallthru
        _
    $region44: #{tpu_custom_call.1} parent=5 // pred_fallthru
      _
    %p915 = scmp.le.s32.totalorder 2, %s15
    // Predicated region
    $region57: #{tpu_custom_call.1} parent=5 // pred_check
      %p916 = pneg %p915
    $region58: #{tpu_custom_call.1} parent=5 // pred_check_branch
      %918 = sbr.rel (%p916) target = $region60
    $region59: #{tpu_custom_call.1} parent=5 // pred_region
      %s919 = ssub.s32 %s15, 2
      // Predicated region
      $region61: #{tpu_custom_call.1} parent=59 // pred_check
        %p920 = pneg %p225
      $region62: #{tpu_custom_call.1} parent=59 // pred_check_branch
        %922 = sbr.rel (%p920) target = $region64
      $region63: #{tpu_custom_call.1} parent=59 // pred_region
        %s923 = smul.u32 2, %s29
        %p924 = scmp.lt.s32.totalorder %s28, 1
        %s925 = scalar_select %p924, %s28, 1
        %p926 = scmp.lt.s32.totalorder %s30, 7
        %s927 = scalar_select %p926, %s30, 7
        %p928 = scmp.lt.s32.totalorder %s923, 3
        %s929 = scalar_select %p928, %s923, 3
        %s930 = smul.addr %s927, 4
        %s931 = sadd.s32 %s929, %s930
        %s932 = smul.addr %s925, 32
        %s933 = sadd.s32 %s931, %s932
        %s934 = smul.addr %s933, 8
        %s935 = scalar_lea.vmem %s6, %s934
      $region64: #{tpu_custom_call.1} parent=59 // pred_fallthru
        _
      // Predicated region
      $region65: #{tpu_custom_call.1} parent=59 // pred_check
        %p936 = pneg %p255
      $region66: #{tpu_custom_call.1} parent=59 // pred_check_branch
        %938 = sbr.rel (%p936) target = $region68
      $region67: #{tpu_custom_call.1} parent=59 // pred_region
        %s939 = smul.u32 2, %s29
        %p940 = scmp.lt.s32.totalorder %s28, 1
        %s941 = scalar_select %p940, %s28, 1
        %p942 = scmp.lt.s32.totalorder %s30, 7
        %s943 = scalar_select %p942, %s30, 7
        %p944 = scmp.lt.s32.totalorder %s939, 3
        %s945 = scalar_select %p944, %s939, 3
        %s946 = smul.addr %s943, 4
        %s947 = sadd.s32 %s945, %s946
        %s948 = smul.addr %s941, 32
        %s949 = sadd.s32 %s947, %s948
        %s950 = smul.addr %s949, 8
        %s951 = scalar_lea.vmem %s7, %s950
      $region68: #{tpu_custom_call.1} parent=59 // pred_fallthru
        _
      // Predicated region
      $region69: #{tpu_custom_call.1} parent=59 // pred_check
        %p952 = pneg %p285
      $region70: #{tpu_custom_call.1} parent=59 // pred_check_branch
        %954 = sbr.rel (%p952) target = $region72
      $region71: #{tpu_custom_call.1} parent=59 // pred_region
        %s955 = smul.u32 2, %s29
        %p956 = scmp.lt.s32.totalorder %s28, 1
        %s957 = scalar_select %p956, %s28, 1
        %p958 = scmp.lt.s32.totalorder %s30, 7
        %s959 = scalar_select %p958, %s30, 7
        %p960 = scmp.lt.s32.totalorder %s955, 3
        %s961 = scalar_select %p960, %s955, 3
        %s962 = smul.addr %s959, 4
        %s963 = sadd.s32 %s961, %s962
        %s964 = smul.addr %s957, 32
        %s965 = sadd.s32 %s963, %s964
        %s966 = smul.addr %s965, 8
        %s967 = scalar_lea.vmem %s8, %s966
      $region72: #{tpu_custom_call.1} parent=59 // pred_fallthru
        _
    $region60: #{tpu_custom_call.1} parent=5 // pred_fallthru
      _
  $region6: #{tpu_custom_call.1} parent=0 // loop_footer
    %s19 = sadd.s32 1, %s15
  $region7: #{tpu_custom_call.1} parent=0 // loop_footer_branch
    %14 = sbr.rel target = $region3
  $region8: #{tpu_custom_call.1} parent=0 // loop_exit
    _

</llo_original>
